<compile_context>
chip_gen: v5e
topology: v5e:2x2
jax: 0.10.0
libtpu: 0.0.40
codegen_flags: <defaults>
</compile_context>

<pallas_src>
import functools

import jax
import jax.numpy as jnp
from jax.experimental import pallas as pl
from jax.experimental.pallas import tpu as pltpu


def _round_up(x, mult):
    return ((x + mult - 1) // mult) * mult


def _get_choise_kernel(x_ref, o_ref, *, d):
    # x_ref: (nblk, 3*d) -- rows 0/1/2 of each flattened (b,s,n) cell, folded into lanes
    # o_ref: (nblk, 6*d) -- flattened (3, 2, d) = [r0,r1 | r0,r2 | r1,r2]
    # Six direct slice->slice copies bound the live vreg ranges (no 3 MiB block load).
    o_ref[:, 0 * d:1 * d] = x_ref[:, 0 * d:1 * d]   # pair (0,1): row 0
    o_ref[:, 1 * d:2 * d] = x_ref[:, 1 * d:2 * d]   # pair (0,1): row 1
    o_ref[:, 2 * d:3 * d] = x_ref[:, 0 * d:1 * d]   # pair (0,2): row 0
    o_ref[:, 3 * d:4 * d] = x_ref[:, 2 * d:3 * d]   # pair (0,2): row 2
    o_ref[:, 4 * d:5 * d] = x_ref[:, 1 * d:2 * d]   # pair (1,2): row 1
    o_ref[:, 5 * d:6 * d] = x_ref[:, 2 * d:3 * d]   # pair (1,2): row 2


def get_choise(x, *, block_cells=None, vmem_limit_bytes=48 * 1024 * 1024):
    """x: (b, s, n, m, d) with m >= 3  ->  (b, s, n, 3, 2, d)."""
    b, s, n, m, d = x.shape
    assert m >= 3, "get_choise requires m >= 3 (indices 0,1,2 are gathered)"

    B = b * s * n
    itemsize = jnp.dtype(x.dtype).itemsize
    # dtype-aware min-tile second-to-last dim: 8 (4B), 16 (2B), 32 (1B)
    sublane = max(8, 32 // itemsize)

    # Keep unused rows (3..m-1) out of HBM traffic. If 3*d is 128-aligned the BlockSpec
    # below reads only the first 3*d lanes per row (strided DMA) -- no extra XLA pass.
    if m > 3 and (3 * d) % 128 != 0:
        x = x[..., :3, :]          # fallback: lane alignment would otherwise break
        m_eff = 3
    else:
        m_eff = m
    x2 = x.reshape(B, m_eff * d)   # contiguous reshape: free

    if block_cells is None:
        # Double-buffered in-flight bytes/step: 2 * (3d + 6d) * nblk * itemsize.
        # ~40 MiB keeps full double buffering inside v7x's 64 MiB VMEM and is large
        # enough to hide per-grid-step overhead on v5e/v6e.
        budget = min(40 * 1024 * 1024,
                     max(vmem_limit_bytes - 8 * 1024 * 1024, 8 * 1024 * 1024))
        nblk = budget // (2 * 9 * d * itemsize)
    else:
        nblk = block_cells
    nblk = max(sublane, (nblk // sublane) * sublane)
    # Guarantee >= 2 grid steps so ("parallel",) can split rows across both v7x TCs.
    nblk = min(nblk, _round_up(max(1, -(-B // 2)), sublane))

    num_blocks = pl.cdiv(B, nblk)
    kernel = functools.partial(_get_choise_kernel, d=d)

    # No pad, no tail slice: ragged last block is masked by Pallas; the copy is strictly
    # row-wise so any garbage rows in the padded region map only to dropped output rows.
    out_flat = pl.pallas_call(
        kernel,
        out_shape=jax.ShapeDtypeStruct((B, 6 * d), x.dtype),
        grid_spec=pltpu.PrefetchScalarGridSpec(
            num_scalar_prefetch=0,
            grid=(num_blocks,),
            in_specs=[pl.BlockSpec((nblk, 3 * d), lambda i: (i, 0))],
            out_specs=pl.BlockSpec((nblk, 6 * d), lambda i: (i, 0)),
        ),
        compiler_params=pltpu.CompilerParams(
            dimension_semantics=("parallel",),
            vmem_limit_bytes=vmem_limit_bytes,
        ),
    )(x2)

    return out_flat.reshape(b, s, n, 3, 2, d)


def get_choise_ref(x):
    return jnp.stack(
        [x[:, :, :, jnp.array([0, 1])],
         x[:, :, :, jnp.array([0, 2])],
         x[:, :, :, jnp.array([1, 2])]],
        axis=3,
    )


if __name__ == "__main__":
    key = jax.random.PRNGKey(0)

    # Shapes implied by raven_clip: s = w = 16, n = 8 choices, m = 3 rows, d = low_dim = 128
    b, s, n, m, d = 2, 16, 8, 3, 128
    x = jax.random.normal(key, (b, s, n, m, d), dtype=jnp.float32)

    out = jax.block_until_ready(get_choise(x))
    assert out.shape == (b, s, n, 3, 2, d)
    assert jnp.array_equal(out, get_choise_ref(x))

    # Exercise the strided-read path (m > 3: unused rows never DMA'd) ...
    key2 = jax.random.PRNGKey(1)
    x5 = jax.random.normal(key2, (b, s, n, 5, d), dtype=jnp.float32)
    out5 = jax.block_until_ready(get_choise(x5))
    assert jnp.array_equal(out5, get_choise_ref(x5))

    # ... and the ragged-last-block path (B = 256 with nblk = 96 -> grid of 3).
    out_ragged = jax.block_until_ready(get_choise(x, block_cells=96))
    assert jnp.array_equal(out_ragged, get_choise_ref(x))

    print("KERNEL_OK")
</pallas_src>

<mosaic_0001>
module attributes {stable_mosaic.version = 11 : i64} {
  func.func @_get_choise_kernel(%arg0: i32, %arg1: memref<128x384xf32, #tpu.memory_space<vmem>>, %arg2: memref<128x768xf32, #tpu.memory_space<vmem>>) attributes {dimension_semantics = [#tpu.dimension_semantics<parallel>], iteration_bounds = array<i64: 2>, scalar_prefetch = 0 : i64, scratch_operands = 0 : i64, tpu.core_type = #tpu.core_type<tc>, window_params = [{transform_indices = @transform_0, window_bounds = array<i64: 128, 384>}, {transform_indices = @transform_1, window_bounds = array<i64: 128, 768>}]} {
    %c0 = arith.constant 0 : index
    %c0_0 = arith.constant 0 : index
    %0 = vector.load %arg1[%c0, %c0_0] : memref<128x384xf32, #tpu.memory_space<vmem>>, vector<128x128xf32>
    %c0_1 = arith.constant 0 : index
    %c0_2 = arith.constant 0 : index
    %1 = vector.load %arg2[%c0_1, %c0_2] : memref<128x768xf32, #tpu.memory_space<vmem>>, vector<128x128xf32>
    tpu.vector_store %arg2[%c0_1, %c0_2], %0 {strides = array<i32>} : memref<128x768xf32, #tpu.memory_space<vmem>>, vector<128x128xf32>,
    %c0_3 = arith.constant 0 : index
    %c128 = arith.constant 128 : index
    %2 = vector.load %arg1[%c0_3, %c128] : memref<128x384xf32, #tpu.memory_space<vmem>>, vector<128x128xf32>
    %c0_4 = arith.constant 0 : index
    %c128_5 = arith.constant 128 : index
    %3 = vector.load %arg2[%c0_4, %c128_5] : memref<128x768xf32, #tpu.memory_space<vmem>>, vector<128x128xf32>
    tpu.vector_store %arg2[%c0_4, %c128_5], %2 {strides = array<i32>} : memref<128x768xf32, #tpu.memory_space<vmem>>, vector<128x128xf32>,
    %c0_6 = arith.constant 0 : index
    %c0_7 = arith.constant 0 : index
    %4 = vector.load %arg1[%c0_6, %c0_7] : memref<128x384xf32, #tpu.memory_space<vmem>>, vector<128x128xf32>
    %c0_8 = arith.constant 0 : index
    %c256 = arith.constant 256 : index
    %5 = vector.load %arg2[%c0_8, %c256] : memref<128x768xf32, #tpu.memory_space<vmem>>, vector<128x128xf32>
    tpu.vector_store %arg2[%c0_8, %c256], %4 {strides = array<i32>} : memref<128x768xf32, #tpu.memory_space<vmem>>, vector<128x128xf32>,
    %c0_9 = arith.constant 0 : index
    %c256_10 = arith.constant 256 : index
    %6 = vector.load %arg1[%c0_9, %c256_10] : memref<128x384xf32, #tpu.memory_space<vmem>>, vector<128x128xf32>
    %c0_11 = arith.constant 0 : index
    %c384 = arith.constant 384 : index
    %7 = vector.load %arg2[%c0_11, %c384] : memref<128x768xf32, #tpu.memory_space<vmem>>, vector<128x128xf32>
    tpu.vector_store %arg2[%c0_11, %c384], %6 {strides = array<i32>} : memref<128x768xf32, #tpu.memory_space<vmem>>, vector<128x128xf32>,
    %c0_12 = arith.constant 0 : index
    %c128_13 = arith.constant 128 : index
    %8 = vector.load %arg1[%c0_12, %c128_13] : memref<128x384xf32, #tpu.memory_space<vmem>>, vector<128x128xf32>
    %c0_14 = arith.constant 0 : index
    %c512 = arith.constant 512 : index
    %9 = vector.load %arg2[%c0_14, %c512] : memref<128x768xf32, #tpu.memory_space<vmem>>, vector<128x128xf32>
    tpu.vector_store %arg2[%c0_14, %c512], %8 {strides = array<i32>} : memref<128x768xf32, #tpu.memory_space<vmem>>, vector<128x128xf32>,
    %c0_15 = arith.constant 0 : index
    %c256_16 = arith.constant 256 : index
    %10 = vector.load %arg1[%c0_15, %c256_16] : memref<128x384xf32, #tpu.memory_space<vmem>>, vector<128x128xf32>
    %c0_17 = arith.constant 0 : index
    %c640 = arith.constant 640 : index
    %11 = vector.load %arg2[%c0_17, %c640] : memref<128x768xf32, #tpu.memory_space<vmem>>, vector<128x128xf32>
    tpu.vector_store %arg2[%c0_17, %c640], %10 {strides = array<i32>} : memref<128x768xf32, #tpu.memory_space<vmem>>, vector<128x128xf32>,
    return
  }
  func.func @transform_0(%arg0: i32) -> (i32, i32) {
    %c0_i32 = arith.constant 0 : i32
    %c0_i32_0 = arith.constant 0 : i32
    return %arg0, %c0_i32 : i32, i32
  }
  func.func @transform_1(%arg0: i32) -> (i32, i32) {
    %c0_i32 = arith.constant 0 : i32
    %c0_i32_0 = arith.constant 0 : i32
    return %arg0, %c0_i32 : i32, i32
  }
}

</mosaic_0001>

<llo_original>
// kernel: tpu_custom_call.1
$region0: #{tpu_custom_call.1}
  #allocation0 [shape = 'u32[]', space=smem, size = 0x4, offset = 0x4, fixed_abs, tag = 'smem constant byte address 0x4 - core index']
  #allocation1 [shape = 'u32[72,128]{1,0:T(1,128)}', space=vmem, size = 0x9000, scoped, tag = 'internal scratch']
  %s0 = inlined_call_operand.hbm [shape: f32[256,384], index: 0, kind: input, shape index: {}]
  %s1 = inlined_call_operand.hbm [shape: f32[256,768], index: 1, kind: output, shape index: {}]
  %s2 = sld [smem:[#allocation0]]
  $region41: #{tpu_custom_call.1} parent=0
    _
  %s4 = ssub.s32 1, %s2
  %s5 = scalar_select 0, %s4, %s2
  $region1: #{tpu_custom_call.1} parent=0
    #allocation2 [shape = 'u8[393216]{0}', space=vmem, size = 0x60000, scoped, tag = 'input window, operand 0']
    #allocation3 [shape = 's32[2]{0}', space=sflag, size = 0x8, scoped, tag = 'scoped memory for tpu_custom_call.1']
    #allocation4 [shape = 's32[2]{0}', space=sflag, size = 0x8, scoped, tag = 'scoped memory for tpu_custom_call.1']
    #allocation5 [shape = 'u8[786432]{0}', space=vmem, size = 0xc0000, scoped, tag = 'output window, operand 0']
    %6 = vsyncpa [#allocation3], 0
    %s7 = scalar_lea.sflag [#allocation3], 1
    %8 = vsyncpa %s7, 0
    %9 = vsyncpa [#allocation4], 0
    %s10 = scalar_lea.sflag [#allocation4], 1
    %11 = vsyncpa %s10, 0
    loop: start=0, step=1, limit=4
    $region2: #{tpu_custom_call.1} parent=1 // loop_pre_header
      _
    $region3: #{tpu_custom_call.1} parent=1 // loop_header
      %s13 = sphi 0, %s17
      %p14 = scmp.ge.s32.totalorder %s13, 4
      %s23 = sphi 0, %s25
      %s26 = sphi 0, %s23
      %s27 = sphi 0, %s26
      %s43 = sphi 0, %s27
      %s49 = sphi 0, %s51
      %s52 = sphi 0, %s49
      %s53 = sphi 0, %s52
      %s69 = sphi 0, %s53
    $region4: #{tpu_custom_call.1} parent=1 // loop_header_branch
      %16 = sbr.rel (%p14) target = $region8
    $region5: #{tpu_custom_call.1} parent=1 // loop_body
      %s18 = ssub.s32 %s13, 1
      %s19 = ssub.s32 %s13, 2
      %s20 = sadd.s32 %s13, 1
      %s21 = ssub.s32 %s13, %s20
      %p22 = scmp.eq.s32.totalorder %s21, 0
      %s24 = sadd.s32 %s23, 1
      %s25 = scalar_select %p22, %s23, %s24
      %p28 = pneg %p22
      %p29 = scmp.eq.s32.totalorder %s13, 1
      %p30 = por %p28, %p29
      %p31 = scmp.ne.s32.totalorder %s23, %s26
      %p32 = scmp.eq.s32.totalorder %s13, 0
      %p33 = por %p31, %p32
      %p34 = scmp.ne.s32.totalorder %s23, %s26
      %p35 = scmp.eq.s32.totalorder %s18, 1
      %p36 = por %p34, %p35
      %p37 = scmp.ne.s32.totalorder %s26, %s27
      %p38 = scmp.eq.s32.totalorder %s18, 0
      %p39 = por %p37, %p38
      %p40 = scmp.ne.s32.totalorder %s26, %s27
      %p41 = scmp.eq.s32.totalorder %s19, 1
      %p42 = por %p40, %p41
      %p44 = scmp.ne.s32.totalorder %s27, %s43
      %p45 = scmp.eq.s32.totalorder %s19, 0
      %p46 = por %p44, %p45
      %s47 = ssub.s32 %s13, %s20
      %p48 = scmp.eq.s32.totalorder %s47, 0
      %s50 = sadd.s32 %s49, 1
      %s51 = scalar_select %p48, %s49, %s50
      %p54 = pneg %p48
      %p55 = scmp.eq.s32.totalorder %s13, 1
      %p56 = por %p54, %p55
      %p57 = scmp.ne.s32.totalorder %s49, %s52
      %p58 = scmp.eq.s32.totalorder %s13, 0
      %p59 = por %p57, %p58
      %p60 = scmp.ne.s32.totalorder %s49, %s52
      %p61 = scmp.eq.s32.totalorder %s18, 1
      %p62 = por %p60, %p61
      %p63 = scmp.ne.s32.totalorder %s52, %s53
      %p64 = scmp.eq.s32.totalorder %s18, 0
      %p65 = por %p63, %p64
      %p66 = scmp.ne.s32.totalorder %s52, %s53
      %p67 = scmp.eq.s32.totalorder %s19, 1
      %p68 = por %p66, %p67
      %p70 = scmp.ne.s32.totalorder %s53, %s69
      %p71 = scmp.eq.s32.totalorder %s19, 0
      %p72 = por %p70, %p71
      %p73 = scmp.le.s32.totalorder 1, %s13
      %p74 = scmp.lt.s32.totalorder %s13, 3
      %p75 = pnand %p73, %p74
      %p76 = pneg %p75
      // Predicated region
      $region9: #{tpu_custom_call.1} parent=5 // pred_check
        _
      $region10: #{tpu_custom_call.1} parent=5 // pred_check_branch
        %78 = sbr.rel (%p75) target = $region12
      $region11: #{tpu_custom_call.1} parent=5 // pred_region
        %s79 = ssub.s32 %s13, 1
      $region12: #{tpu_custom_call.1} parent=5 // pred_fallthru
        _
      %p80 = scmp.lt.s32.totalorder %s13, 2
      // Predicated region
      $region13: #{tpu_custom_call.1} parent=5 // pred_check
        %p81 = pneg %p80
      $region14: #{tpu_custom_call.1} parent=5 // pred_check_branch
        %83 = sbr.rel (%p81) target = $region16
      $region15: #{tpu_custom_call.1} parent=5 // pred_region
        // Predicated region
        $region17: #{tpu_custom_call.1} parent=15 // pred_check
          %p84 = pneg %p33
        $region18: #{tpu_custom_call.1} parent=15 // pred_check_branch
          %86 = sbr.rel (%p84) target = $region20
        $region19: #{tpu_custom_call.1} parent=15 // pred_region
          %s87 = sand.u32 %s23, 1
          %s88 = scalar_lea.sflag [#allocation3], %s87
          %s89 = sand.u32 %s23, 1
          %s90 = smul.addr %s89, 384
          %s91 = scalar_lea.vmem [#allocation2], %s90
          %s92 = smul.u32 16, %s13
          %94 = vsyncadd %s88, 0
          %s95 = smul.addr %s92, 3
          %s96 = smul.addr %s95, 8
          %s97 = scalar_lea.hbm %s0, %s96
          %s98 = sshll.u32 %s97, 4
          %s99 = int_to_ptr.hbm [resolvable:$true] %s98
          %s100 = sshll.u32 %s91, 4
          %s101 = int_to_ptr.vmem [resolvable:$true] %s100
          %106 = dma.hbm_to_vmem [thread:$0]  %s99, 6144, %s101, %s88, 384, 384, 24
        $region20: #{tpu_custom_call.1} parent=15 // pred_fallthru
          _
      $region16: #{tpu_custom_call.1} parent=5 // pred_fallthru
        _
      %p107 = scmp.le.s32.totalorder 1, %s13
      %p108 = scmp.lt.s32.totalorder %s13, 3
      %p109 = pnand %p107, %p108
      %p110 = pneg %p109
      // Predicated region
      $region21: #{tpu_custom_call.1} parent=5 // pred_check
        _
      $region22: #{tpu_custom_call.1} parent=5 // pred_check_branch
        %112 = sbr.rel (%p109) target = $region24
      $region23: #{tpu_custom_call.1} parent=5 // pred_region
        %s113 = ssub.s32 %s13, 1
        %s114 = sand.u32 %s26, 1
        %s115 = scalar_lea.sflag [#allocation3], %s114
        %s116 = sand.u32 %s26, 1
        %s117 = smul.addr %s116, 384
        %s118 = scalar_lea.vmem [#allocation2], %s117
        // Predicated region
        $region25: #{tpu_custom_call.1} parent=23 // pred_check
          %p119 = pneg %p39
        $region26: #{tpu_custom_call.1} parent=23 // pred_check_branch
          %121 = sbr.rel (%p119) target = $region28
        $region27: #{tpu_custom_call.1} parent=23 // pred_region
          %123 = dma.done %s115, 6144
        $region28: #{tpu_custom_call.1} parent=23 // pred_fallthru
          _
        %s124 = sand.u32 %s26, 1
        %s125 = scalar_lea.sflag [#allocation3], %s124
        %s126 = sand.u32 %s26, 1
        %s127 = smul.addr %s126, 384
        %s128 = scalar_lea.vmem [#allocation2], %s127
        %p129 = pneg %p39
        %p130 = pneg %p36
        %p131 = pneg %p65
        %p132 = pneg %p62
        %s133 = sand.u32 %s52, 1
        %s134 = scalar_lea.sflag [#allocation4], %s133
        %s135 = sand.u32 %s52, 1
        %s136 = smul.addr %s135, 768
        %s137 = scalar_lea.vmem [#allocation5], %s136
        %s138 = smul.u32 16, %s18
        %s139 = smul.u32 16, %s18
        %v140 = vld [vmem:[%s118] sm:$0xff]
        %v141 = vld [vmem:[%s118 + $0x18] sm:$0xff]
        %v142 = vld [vmem:[%s118 + $0x30] sm:$0xff]
        %v143 = vld [vmem:[%s118 + $0x48] sm:$0xff]
        %v144 = vld [vmem:[%s118 + $0x60] sm:$0xff]
        %v145 = vld [vmem:[%s118 + $0x78] sm:$0xff]
        %v146 = vld [vmem:[%s118 + $0x90] sm:$0xff]
        %v147 = vld [vmem:[%s118 + $0xa8] sm:$0xff]
        %v148 = vld [vmem:[%s118 + $0xc0] sm:$0xff]
        %v149 = vld [vmem:[%s118 + $0xd8] sm:$0xff]
        %v150 = vld [vmem:[%s118 + $0xf0] sm:$0xff]
        %v151 = vld [vmem:[%s118 + $0x108] sm:$0xff]
        %v152 = vld [vmem:[%s118 + $0x120] sm:$0xff]
        %v153 = vld [vmem:[%s118 + $0x138] sm:$0xff]
        %v154 = vld [vmem:[%s118 + $0x150] sm:$0xff]
        %v155 = vld [vmem:[%s118 + $0x168] sm:$0xff]
        %156 = vst [vmem:[%s137] sm:$0xff] %v140
        %157 = vst [vmem:[%s137 + $0x30] sm:$0xff] %v141
        %158 = vst [vmem:[%s137 + $0x60] sm:$0xff] %v142
        %159 = vst [vmem:[%s137 + $0x90] sm:$0xff] %v143
        %160 = vst [vmem:[%s137 + $0xc0] sm:$0xff] %v144
        %161 = vst [vmem:[%s137 + $0xf0] sm:$0xff] %v145
        %162 = vst [vmem:[%s137 + $0x120] sm:$0xff] %v146
        %163 = vst [vmem:[%s137 + $0x150] sm:$0xff] %v147
        %164 = vst [vmem:[%s137 + $0x180] sm:$0xff] %v148
        %165 = vst [vmem:[%s137 + $0x1b0] sm:$0xff] %v149
        %166 = vst [vmem:[%s137 + $0x1e0] sm:$0xff] %v150
        %167 = vst [vmem:[%s137 + $0x210] sm:$0xff] %v151
        %168 = vst [vmem:[%s137 + $0x240] sm:$0xff] %v152
        %169 = vst [vmem:[%s137 + $0x270] sm:$0xff] %v153
        %170 = vst [vmem:[%s137 + $0x2a0] sm:$0xff] %v154
        %171 = vst [vmem:[%s137 + $0x2d0] sm:$0xff] %v155
        %v172 = vld [vmem:[%s118 + $0x8] sm:$0xff]
        %v173 = vld [vmem:[%s118 + $0x20] sm:$0xff]
        %v174 = vld [vmem:[%s118 + $0x38] sm:$0xff]
        %v175 = vld [vmem:[%s118 + $0x50] sm:$0xff]
        %v176 = vld [vmem:[%s118 + $0x68] sm:$0xff]
        %v177 = vld [vmem:[%s118 + $0x80] sm:$0xff]
        %v178 = vld [vmem:[%s118 + $0x98] sm:$0xff]
        %v179 = vld [vmem:[%s118 + $0xb0] sm:$0xff]
        %v180 = vld [vmem:[%s118 + $0xc8] sm:$0xff]
        %v181 = vld [vmem:[%s118 + $0xe0] sm:$0xff]
        %v182 = vld [vmem:[%s118 + $0xf8] sm:$0xff]
        %v183 = vld [vmem:[%s118 + $0x110] sm:$0xff]
        %v184 = vld [vmem:[%s118 + $0x128] sm:$0xff]
        %v185 = vld [vmem:[%s118 + $0x140] sm:$0xff]
        %v186 = vld [vmem:[%s118 + $0x158] sm:$0xff]
        %v187 = vld [vmem:[%s118 + $0x170] sm:$0xff]
        %188 = vst [vmem:[%s137 + $0x8] sm:$0xff] %v172
        %189 = vst [vmem:[%s137 + $0x38] sm:$0xff] %v173
        %190 = vst [vmem:[%s137 + $0x68] sm:$0xff] %v174
        %191 = vst [vmem:[%s137 + $0x98] sm:$0xff] %v175
        %192 = vst [vmem:[%s137 + $0xc8] sm:$0xff] %v176
        %193 = vst [vmem:[%s137 + $0xf8] sm:$0xff] %v177
        %194 = vst [vmem:[%s137 + $0x128] sm:$0xff] %v178
        %195 = vst [vmem:[%s137 + $0x158] sm:$0xff] %v179
        %196 = vst [vmem:[%s137 + $0x188] sm:$0xff] %v180
        %197 = vst [vmem:[%s137 + $0x1b8] sm:$0xff] %v181
        %198 = vst [vmem:[%s137 + $0x1e8] sm:$0xff] %v182
        %199 = vst [vmem:[%s137 + $0x218] sm:$0xff] %v183
        %200 = vst [vmem:[%s137 + $0x248] sm:$0xff] %v184
        %201 = vst [vmem:[%s137 + $0x278] sm:$0xff] %v185
        %202 = vst [vmem:[%s137 + $0x2a8] sm:$0xff] %v186
        %203 = vst [vmem:[%s137 + $0x2d8] sm:$0xff] %v187
        %v204 = vld [vmem:[%s118] sm:$0xff]
        %v205 = vld [vmem:[%s118 + $0x18] sm:$0xff]
        %v206 = vld [vmem:[%s118 + $0x30] sm:$0xff]
        %v207 = vld [vmem:[%s118 + $0x48] sm:$0xff]
        %v208 = vld [vmem:[%s118 + $0x60] sm:$0xff]
        %v209 = vld [vmem:[%s118 + $0x78] sm:$0xff]
        %v210 = vld [vmem:[%s118 + $0x90] sm:$0xff]
        %v211 = vld [vmem:[%s118 + $0xa8] sm:$0xff]
        %v212 = vld [vmem:[%s118 + $0xc0] sm:$0xff]
        %v213 = vld [vmem:[%s118 + $0xd8] sm:$0xff]
        %v214 = vld [vmem:[%s118 + $0xf0] sm:$0xff]
        %v215 = vld [vmem:[%s118 + $0x108] sm:$0xff]
        %v216 = vld [vmem:[%s118 + $0x120] sm:$0xff]
        %v217 = vld [vmem:[%s118 + $0x138] sm:$0xff]
        %v218 = vld [vmem:[%s118 + $0x150] sm:$0xff]
        %v219 = vld [vmem:[%s118 + $0x168] sm:$0xff]
        %220 = vst [vmem:[%s137 + $0x10] sm:$0xff] %v204
        %221 = vst [vmem:[%s137 + $0x40] sm:$0xff] %v205
        %222 = vst [vmem:[%s137 + $0x70] sm:$0xff] %v206
        %223 = vst [vmem:[%s137 + $0xa0] sm:$0xff] %v207
        %224 = vst [vmem:[%s137 + $0xd0] sm:$0xff] %v208
        %225 = vst [vmem:[%s137 + $0x100] sm:$0xff] %v209
        %226 = vst [vmem:[%s137 + $0x130] sm:$0xff] %v210
        %227 = vst [vmem:[%s137 + $0x160] sm:$0xff] %v211
        %228 = vst [vmem:[%s137 + $0x190] sm:$0xff] %v212
        %229 = vst [vmem:[%s137 + $0x1c0] sm:$0xff] %v213
        %230 = vst [vmem:[%s137 + $0x1f0] sm:$0xff] %v214
        %231 = vst [vmem:[%s137 + $0x220] sm:$0xff] %v215
        %232 = vst [vmem:[%s137 + $0x250] sm:$0xff] %v216
        %233 = vst [vmem:[%s137 + $0x280] sm:$0xff] %v217
        %234 = vst [vmem:[%s137 + $0x2b0] sm:$0xff] %v218
        %235 = vst [vmem:[%s137 + $0x2e0] sm:$0xff] %v219
        %v236 = vld [vmem:[%s118 + $0x10] sm:$0xff]
        %v237 = vld [vmem:[%s118 + $0x28] sm:$0xff]
        %v238 = vld [vmem:[%s118 + $0x40] sm:$0xff]
        %v239 = vld [vmem:[%s118 + $0x58] sm:$0xff]
        %v240 = vld [vmem:[%s118 + $0x70] sm:$0xff]
        %v241 = vld [vmem:[%s118 + $0x88] sm:$0xff]
        %v242 = vld [vmem:[%s118 + $0xa0] sm:$0xff]
        %v243 = vld [vmem:[%s118 + $0xb8] sm:$0xff]
        %v244 = vld [vmem:[%s118 + $0xd0] sm:$0xff]
        %v245 = vld [vmem:[%s118 + $0xe8] sm:$0xff]
        %v246 = vld [vmem:[%s118 + $0x100] sm:$0xff]
        %v247 = vld [vmem:[%s118 + $0x118] sm:$0xff]
        %v248 = vld [vmem:[%s118 + $0x130] sm:$0xff]
        %v249 = vld [vmem:[%s118 + $0x148] sm:$0xff]
        %v250 = vld [vmem:[%s118 + $0x160] sm:$0xff]
        %v251 = vld [vmem:[%s118 + $0x178] sm:$0xff]
        %252 = vst [vmem:[%s137 + $0x18] sm:$0xff] %v236
        %253 = vst [vmem:[%s137 + $0x48] sm:$0xff] %v237
        %254 = vst [vmem:[%s137 + $0x78] sm:$0xff] %v238
        %255 = vst [vmem:[%s137 + $0xa8] sm:$0xff] %v239
        %256 = vst [vmem:[%s137 + $0xd8] sm:$0xff] %v240
        %257 = vst [vmem:[%s137 + $0x108] sm:$0xff] %v241
        %258 = vst [vmem:[%s137 + $0x138] sm:$0xff] %v242
        %259 = vst [vmem:[%s137 + $0x168] sm:$0xff] %v243
        %260 = vst [vmem:[%s137 + $0x198] sm:$0xff] %v244
        %261 = vst [vmem:[%s137 + $0x1c8] sm:$0xff] %v245
        %262 = vst [vmem:[%s137 + $0x1f8] sm:$0xff] %v246
        %263 = vst [vmem:[%s137 + $0x228] sm:$0xff] %v247
        %264 = vst [vmem:[%s137 + $0x258] sm:$0xff] %v248
        %265 = vst [vmem:[%s137 + $0x288] sm:$0xff] %v249
        %266 = vst [vmem:[%s137 + $0x2b8] sm:$0xff] %v250
        %267 = vst [vmem:[%s137 + $0x2e8] sm:$0xff] %v251
        %v268 = vld [vmem:[%s118 + $0x8] sm:$0xff]
        %v269 = vld [vmem:[%s118 + $0x20] sm:$0xff]
        %v270 = vld [vmem:[%s118 + $0x38] sm:$0xff]
        %v271 = vld [vmem:[%s118 + $0x50] sm:$0xff]
        %v272 = vld [vmem:[%s118 + $0x68] sm:$0xff]
        %v273 = vld [vmem:[%s118 + $0x80] sm:$0xff]
        %v274 = vld [vmem:[%s118 + $0x98] sm:$0xff]
        %v275 = vld [vmem:[%s118 + $0xb0] sm:$0xff]
        %v276 = vld [vmem:[%s118 + $0xc8] sm:$0xff]
        %v277 = vld [vmem:[%s118 + $0xe0] sm:$0xff]
        %v278 = vld [vmem:[%s118 + $0xf8] sm:$0xff]
        %v279 = vld [vmem:[%s118 + $0x110] sm:$0xff]
        %v280 = vld [vmem:[%s118 + $0x128] sm:$0xff]
        %v281 = vld [vmem:[%s118 + $0x140] sm:$0xff]
        %v282 = vld [vmem:[%s118 + $0x158] sm:$0xff]
        %v283 = vld [vmem:[%s118 + $0x170] sm:$0xff]
        %284 = vst [vmem:[%s137 + $0x20] sm:$0xff] %v268
        %285 = vst [vmem:[%s137 + $0x50] sm:$0xff] %v269
        %286 = vst [vmem:[%s137 + $0x80] sm:$0xff] %v270
        %287 = vst [vmem:[%s137 + $0xb0] sm:$0xff] %v271
        %288 = vst [vmem:[%s137 + $0xe0] sm:$0xff] %v272
        %289 = vst [vmem:[%s137 + $0x110] sm:$0xff] %v273
        %290 = vst [vmem:[%s137 + $0x140] sm:$0xff] %v274
        %291 = vst [vmem:[%s137 + $0x170] sm:$0xff] %v275
        %292 = vst [vmem:[%s137 + $0x1a0] sm:$0xff] %v276
        %293 = vst [vmem:[%s137 + $0x1d0] sm:$0xff] %v277
        %294 = vst [vmem:[%s137 + $0x200] sm:$0xff] %v278
        %295 = vst [vmem:[%s137 + $0x230] sm:$0xff] %v279
        %296 = vst [vmem:[%s137 + $0x260] sm:$0xff] %v280
        %297 = vst [vmem:[%s137 + $0x290] sm:$0xff] %v281
        %298 = vst [vmem:[%s137 + $0x2c0] sm:$0xff] %v282
        %299 = vst [vmem:[%s137 + $0x2f0] sm:$0xff] %v283
        %v300 = vld [vmem:[%s118 + $0x10] sm:$0xff]
        %v301 = vld [vmem:[%s118 + $0x28] sm:$0xff]
        %v302 = vld [vmem:[%s118 + $0x40] sm:$0xff]
        %v303 = vld [vmem:[%s118 + $0x58] sm:$0xff]
        %v304 = vld [vmem:[%s118 + $0x70] sm:$0xff]
        %v305 = vld [vmem:[%s118 + $0x88] sm:$0xff]
        %v306 = vld [vmem:[%s118 + $0xa0] sm:$0xff]
        %v307 = vld [vmem:[%s118 + $0xb8] sm:$0xff]
        %v308 = vld [vmem:[%s118 + $0xd0] sm:$0xff]
        %v309 = vld [vmem:[%s118 + $0xe8] sm:$0xff]
        %v310 = vld [vmem:[%s118 + $0x100] sm:$0xff]
        %v311 = vld [vmem:[%s118 + $0x118] sm:$0xff]
        %v312 = vld [vmem:[%s118 + $0x130] sm:$0xff]
        %v313 = vld [vmem:[%s118 + $0x148] sm:$0xff]
        %v314 = vld [vmem:[%s118 + $0x160] sm:$0xff]
        %v315 = vld [vmem:[%s118 + $0x178] sm:$0xff]
        %316 = vst [vmem:[%s137 + $0x28] sm:$0xff] %v300
        %317 = vst [vmem:[%s137 + $0x58] sm:$0xff] %v301
        %318 = vst [vmem:[%s137 + $0x88] sm:$0xff] %v302
        %319 = vst [vmem:[%s137 + $0xb8] sm:$0xff] %v303
        %320 = vst [vmem:[%s137 + $0xe8] sm:$0xff] %v304
        %321 = vst [vmem:[%s137 + $0x118] sm:$0xff] %v305
        %322 = vst [vmem:[%s137 + $0x148] sm:$0xff] %v306
        %323 = vst [vmem:[%s137 + $0x178] sm:$0xff] %v307
        %324 = vst [vmem:[%s137 + $0x1a8] sm:$0xff] %v308
        %325 = vst [vmem:[%s137 + $0x1d8] sm:$0xff] %v309
        %326 = vst [vmem:[%s137 + $0x208] sm:$0xff] %v310
        %327 = vst [vmem:[%s137 + $0x238] sm:$0xff] %v311
        %328 = vst [vmem:[%s137 + $0x268] sm:$0xff] %v312
        %329 = vst [vmem:[%s137 + $0x298] sm:$0xff] %v313
        %330 = vst [vmem:[%s137 + $0x2c8] sm:$0xff] %v314
        %331 = vst [vmem:[%s137 + $0x2f8] sm:$0xff] %v315
        %s332 = sand.u32 %s52, 1
        %s333 = scalar_lea.sflag [#allocation4], %s332
        %s334 = sand.u32 %s52, 1
        %s335 = smul.addr %s334, 768
        %s336 = scalar_lea.vmem [#allocation5], %s335
        // Predicated region
        $region29: #{tpu_custom_call.1} parent=23 // pred_check
          %p337 = pneg %p62
        $region30: #{tpu_custom_call.1} parent=23 // pred_check_branch
          %339 = sbr.rel (%p337) target = $region32
        $region31: #{tpu_custom_call.1} parent=23 // pred_region
          %s340 = smul.u32 16, %s18
          %342 = vsyncadd %s333, 0
          %s343 = smul.addr %s340, 6
          %s344 = smul.addr %s343, 8
          %s345 = scalar_lea.hbm %s1, %s344
          %s346 = sshll.u32 %s336, 4
          %s347 = int_to_ptr.vmem [resolvable:$true] %s346
          %s348 = sshll.u32 %s345, 4
          %s349 = int_to_ptr.hbm [resolvable:$true] %s348
          %354 = dma.vmem_to_hbm [thread:$0]  %s347, 12288, %s349, %s333, 768, 768, 48
        $region32: #{tpu_custom_call.1} parent=23 // pred_fallthru
          _
      $region24: #{tpu_custom_call.1} parent=5 // pred_fallthru
        _
      %p355 = scmp.le.s32.totalorder 2, %s13
      // Predicated region
      $region33: #{tpu_custom_call.1} parent=5 // pred_check
        %p356 = pneg %p355
      $region34: #{tpu_custom_call.1} parent=5 // pred_check_branch
        %358 = sbr.rel (%p356) target = $region36
      $region35: #{tpu_custom_call.1} parent=5 // pred_region
        %s359 = ssub.s32 %s13, 2
        // Predicated region
        $region37: #{tpu_custom_call.1} parent=35 // pred_check
          %p360 = pneg %p68
        $region38: #{tpu_custom_call.1} parent=35 // pred_check_branch
          %362 = sbr.rel (%p360) target = $region40
        $region39: #{tpu_custom_call.1} parent=35 // pred_region
          %s363 = sand.u32 %s53, 1
          %s364 = scalar_lea.sflag [#allocation4], %s363
          %s365 = sand.u32 %s53, 1
          %s366 = smul.addr %s365, 768
          %s367 = scalar_lea.vmem [#allocation5], %s366
          %369 = dma.done %s364, 12288
        $region40: #{tpu_custom_call.1} parent=35 // pred_fallthru
          _
      $region36: #{tpu_custom_call.1} parent=5 // pred_fallthru
        _
    $region6: #{tpu_custom_call.1} parent=1 // loop_footer
      %s17 = sadd.s32 1, %s13
    $region7: #{tpu_custom_call.1} parent=1 // loop_footer_branch
      %12 = sbr.rel target = $region3
    $region8: #{tpu_custom_call.1} parent=1 // loop_exit
      _
    %370 = vsyncpa [#allocation3], 1
    %s371 = scalar_lea.sflag [#allocation3], 1
    %372 = vsyncpa %s371, 1
    %373 = vsyncpa [#allocation4], 1
    %s374 = scalar_lea.sflag [#allocation4], 1
    %375 = vsyncpa %s374, 1

</llo_original>
